<compile_context>
chip_gen: v6e
topology: v6e:2x2x1
jax: 0.10.0
libtpu: 0.0.40
codegen_flags: <defaults>
</compile_context>

<pallas_src>
import jax
import jax.numpy as jnp
from jax.experimental import pallas as pl
from jax.experimental.pallas import tpu as pltpu


_LANES = 512                        # lane-dense width (multiple of 128)
_BLOCK_ROWS = 2048                  # up to (2048, 512) f32 = 4 MiB tiles
_MIN_PALLAS_ELEMS = 2 * 1024 * 1024  # below ~8 MiB f32, let XLA fuse it


def _output_layer_kernel(x_ref, a_ref, o_ref):
    # a = w / 2 tiled to a (1, L) row;  (x + 1) / 2 * w  ==  x * a + a.
    a = a_ref[...]                           # (1, L), broadcast over rows (VPU)
    o_ref[...] = x_ref[...] * a + a


def make_weight_row(weights, dtype=jnp.float32, lanes=_LANES):
    """Pre-scaled, pre-tiled weight row [w0, w1, w0, w1, ...] / 2, shape (1, lanes).

    Compute once per weight update and pass to output_layer_forward(weight_row=...).
    """
    d = weights.shape[0]
    assert lanes % d == 0, "lane width must preserve the weight interleave"
    return (jnp.tile(weights.astype(dtype), lanes // d) * 0.5).reshape(1, lanes)


def _choose_block_rows(rows):
    """Pick a row-block: big tiles, but >=2 grid steps when possible (v7x megacore)."""
    br = min(_BLOCK_ROWS, rows)
    if rows >= 16:
        half = max(8, (-(-rows // 2) // 8) * 8)   # ~rows/2, multiple of 8 sublanes
        br = max(8, (min(br, half) // 8) * 8)
    return br


def output_layer_forward(x, weights, *, weight_row=None, force_pallas=False):
    """out[i, j] = (x[i, j] + 1) / 2 * weights[j].

    x: (B, D) float, weights: (D,) float -> (B, D).  D == 2 for this module.
    """
    B, D = x.shape
    assert weights.shape == (D,)
    dtype = x.dtype
    n = B * D
    L = _LANES

    def _ref(xs):
        return (xs + 1.0) * 0.5 * weights.astype(dtype)

    # Small problems: the pallas_call boundary blocks producer fusion and its
    # launch overhead dominates a 2-flop/elem broadcast multiply.
    if (n < _MIN_PALLAS_ELEMS and not force_pallas) or n < L:
        return _ref(x)

    if weight_row is None:
        weight_row = make_weight_row(weights, dtype, L)

    # Zero-copy lane-dense slab over the leading (rows * L) elements.
    rows = n // L
    main_B = (rows * L) // D
    x_main = x[:main_B].reshape(rows, L)     # prefix slice + bitcast reshape

    block_rows = _choose_block_rows(rows)
    grid = (pl.cdiv(rows, block_rows),)      # ragged last block handled by Pallas

    out_main = pl.pallas_call(
        _output_layer_kernel,
        out_shape=jax.ShapeDtypeStruct((rows, L), dtype),
        grid=grid,
        in_specs=[
            pl.BlockSpec((block_rows, L), lambda i: (i, 0)),
            pl.BlockSpec((1, L), lambda i: (0, 0)),
        ],
        out_specs=pl.BlockSpec((block_rows, L), lambda i: (i, 0)),
        compiler_params=pltpu.CompilerParams(
            dimension_semantics=("parallel",),
            vmem_limit_bytes=40 * 1024 * 1024,
        ),
    )(x_main, weight_row)

    out_main = out_main.reshape(main_B, D)
    if main_B == B:
        return out_main

    # Tiny tail (< L elements): plain JAX, then stitch.
    tail = _ref(x[main_B:])
    return jnp.concatenate([out_main, tail], axis=0)


if __name__ == "__main__":
    key = jax.random.PRNGKey(0)
    kx1, kx2, kx3, kw = jax.random.split(key, 4)

    OUTDIM = 2
    # torch.nn.init.uniform_(outputWeights, 35, 40), done deterministically here.
    weights = jax.random.uniform(
        kw, (OUTDIM,), dtype=jnp.float32, minval=35.0, maxval=40.0
    )
    # Hoisted once (would be cached per weight update in a real model).
    w_row = make_weight_row(weights, jnp.float32)

    # Case 1: exact multiple of the 512-lane slab -> no tail, grid of >= 2 steps.
    B1 = 8192
    x1 = jax.random.normal(kx1, (B1, OUTDIM), dtype=jnp.float32)
    out1 = jax.block_until_ready(
        output_layer_forward(x1, weights, weight_row=w_row, force_pallas=True)
    )

    # Case 2: ragged batch -> partial last grid block + small JAX tail stitch.
    B2 = 8548
    x2 = jax.random.normal(kx2, (B2, OUTDIM), dtype=jnp.float32)
    out2 = jax.block_until_ready(
        output_layer_forward(x2, weights, weight_row=w_row, force_pallas=True)
    )

    # Case 3: small batch -> single-row slab plus tail (forced through Pallas).
    B3 = 300
    x3 = jax.random.normal(kx3, (B3, OUTDIM), dtype=jnp.float32)
    out3 = jax.block_until_ready(
        output_layer_forward(x3, weights, force_pallas=True)
    )

    # Reference check in plain JAX, computed from the original (unclobbered) inputs.
    ref1 = (x1 + 1.0) / 2.0 * weights
    ref2 = (x2 + 1.0) / 2.0 * weights
    ref3 = (x3 + 1.0) / 2.0 * weights
    assert out1.shape == ref1.shape and out2.shape == ref2.shape and out3.shape == ref3.shape
    assert jnp.allclose(out1, ref1, atol=1e-5, rtol=1e-5), "mismatch (case 1)"
    assert jnp.allclose(out2, ref2, atol=1e-5, rtol=1e-5), "mismatch (case 2)"
    assert jnp.allclose(out3, ref3, atol=1e-5, rtol=1e-5), "mismatch (case 3)"

    print("KERNEL_OK")
</pallas_src>

<mosaic_0001>
module attributes {stable_mosaic.version = 11 : i64} {
  func.func @_output_layer_kernel(%arg0: i32, %arg1: memref<16x512xf32, #tpu.memory_space<vmem>>, %arg2: memref<1x512xf32, #tpu.memory_space<vmem>>, %arg3: memref<16x512xf32, #tpu.memory_space<vmem>>) attributes {dimension_semantics = [#tpu.dimension_semantics<parallel>], iteration_bounds = array<i64: 2>, scalar_prefetch = 0 : i64, scratch_operands = 0 : i64, tpu.core_type = #tpu.core_type<tc>, window_params = [{transform_indices = @transform_0, window_bounds = array<i64: 16, 512>}, {pipeline_mode = #tpu.pipeline_mode<synchronous>, transform_indices = @transform_1, window_bounds = array<i64: 1, 512>}, {transform_indices = @transform_2, window_bounds = array<i64: 16, 512>}]} {
    %c0 = arith.constant 0 : index
    %c0_0 = arith.constant 0 : index
    %0 = vector.load %arg2[%c0, %c0_0] : memref<1x512xf32, #tpu.memory_space<vmem>>, vector<1x512xf32>
    %c0_1 = arith.constant 0 : index
    %c0_2 = arith.constant 0 : index
    %1 = vector.load %arg1[%c0_1, %c0_2] : memref<16x512xf32, #tpu.memory_space<vmem>>, vector<16x512xf32>
    %2 = vector.broadcast %0 : vector<1x512xf32> to vector<16x512xf32>
    %3 = arith.mulf %1, %2 : vector<16x512xf32>
    %4 = vector.broadcast %0 : vector<1x512xf32> to vector<16x512xf32>
    %5 = arith.addf %3, %4 : vector<16x512xf32>
    %c0_3 = arith.constant 0 : index
    %c0_4 = arith.constant 0 : index
    %6 = vector.load %arg3[%c0_3, %c0_4] : memref<16x512xf32, #tpu.memory_space<vmem>>, vector<16x512xf32>
    tpu.vector_store %arg3[%c0_3, %c0_4], %5 {strides = array<i32>} : memref<16x512xf32, #tpu.memory_space<vmem>>, vector<16x512xf32>,
    return
  }
  func.func @transform_0(%arg0: i32) -> (i32, i32) {
    %c0_i32 = arith.constant 0 : i32
    %c0_i32_0 = arith.constant 0 : i32
    return %arg0, %c0_i32 : i32, i32
  }
  func.func @transform_1(%arg0: i32) -> (i32, i32) {
    %c0_i32 = arith.constant 0 : i32
    %c0_i32_0 = arith.constant 0 : i32
    %c0_i32_1 = arith.constant 0 : i32
    return %c0_i32, %c0_i32_0 : i32, i32
  }
  func.func @transform_2(%arg0: i32) -> (i32, i32) {
    %c0_i32 = arith.constant 0 : i32
    %c0_i32_0 = arith.constant 0 : i32
    return %arg0, %c0_i32 : i32, i32
  }
}

</mosaic_0001>

<llo_original>
// kernel: tpu_custom_call.1
$region0: #{tpu_custom_call.1}
  #allocation0 [shape = 'u32[]', space=smem, size = 0x4, offset = 0x4, fixed_abs, tag = 'smem constant byte address 0x4 - core index']
  #allocation1 [shape = 'u32[144,128]{1,0:T(1,128)}', space=vmem, size = 0x12000, scoped, tag = 'internal scratch']
  %s0 = inlined_call_operand.hbm [shape: f32[32,512], index: 0, kind: input, shape index: {}]
  %s1 = inlined_call_operand.hbm [shape: f32[1,512], index: 1, kind: input, shape index: {}]
  %s2 = inlined_call_operand.hbm [shape: f32[32,512], index: 2, kind: output, shape index: {}]
  %s3 = sld [smem:[#allocation0]]
  $region49: #{tpu_custom_call.1} parent=0
    _
  %s5 = ssub.s32 1, %s3
  %s6 = scalar_select 0, %s5, %s3
  $region1: #{tpu_custom_call.1} parent=0
    #allocation2 [shape = 'u8[65536]{0}', space=vmem, size = 0x10000, scoped, tag = 'input window, operand 0']
    #allocation3 [shape = 's32[2]{0}', space=sflag, size = 0x8, scoped, tag = 'scoped memory for tpu_custom_call.1']
    #allocation4 [shape = 's32[2]{0}', space=sflag, size = 0x8, scoped, tag = 'scoped memory for tpu_custom_call.1']
    #allocation5 [shape = 'u8[2048]{0}', space=vmem, size = 0x800, scoped, tag = 'input window, operand 1, single buffered']
    #allocation6 [shape = 's32[1]{0}', space=sflag, size = 0x4, scoped, tag = 'scoped memory for tpu_custom_call.1']
    #allocation7 [shape = 'u8[65536]{0}', space=vmem, size = 0x10000, scoped, tag = 'output window, operand 0']
    %7 = vsyncpa [#allocation3], 0
    %s8 = scalar_lea.sflag [#allocation3], 1
    %9 = vsyncpa %s8, 0
    %10 = vsyncpa [#allocation6], 0
    %11 = vsyncpa [#allocation4], 0
    %s12 = scalar_lea.sflag [#allocation4], 1
    %13 = vsyncpa %s12, 0
    loop: start=0, step=1, limit=4
    $region2: #{tpu_custom_call.1} parent=1 // loop_pre_header
      _
    $region3: #{tpu_custom_call.1} parent=1 // loop_header
      %s15 = sphi 0, %s19
      %p16 = scmp.ge.s32.totalorder %s15, 4
      %s25 = sphi 0, %s27
      %s28 = sphi 0, %s25
      %s29 = sphi 0, %s28
      %s45 = sphi 0, %s29
      %s49 = sphi 0, %s49
      %s51 = sphi 0, %s49
      %s52 = sphi 0, %s51
      %s66 = sphi 0, %s52
      %s72 = sphi 0, %s74
      %s75 = sphi 0, %s72
      %s76 = sphi 0, %s75
      %s92 = sphi 0, %s76
    $region4: #{tpu_custom_call.1} parent=1 // loop_header_branch
      %18 = sbr.rel (%p16) target = $region8
    $region5: #{tpu_custom_call.1} parent=1 // loop_body
      %s20 = ssub.s32 %s15, 1
      %s21 = ssub.s32 %s15, 2
      %s22 = sadd.s32 %s15, 1
      %s23 = ssub.s32 %s15, %s22
      %p24 = scmp.eq.s32.totalorder %s23, 0
      %s26 = sadd.s32 %s25, 1
      %s27 = scalar_select %p24, %s25, %s26
      %p30 = pneg %p24
      %p31 = scmp.eq.s32.totalorder %s15, 1
      %p32 = por %p30, %p31
      %p33 = scmp.ne.s32.totalorder %s25, %s28
      %p34 = scmp.eq.s32.totalorder %s15, 0
      %p35 = por %p33, %p34
      %p36 = scmp.ne.s32.totalorder %s25, %s28
      %p37 = scmp.eq.s32.totalorder %s20, 1
      %p38 = por %p36, %p37
      %p39 = scmp.ne.s32.totalorder %s28, %s29
      %p40 = scmp.eq.s32.totalorder %s20, 0
      %p41 = por %p39, %p40
      %p42 = scmp.ne.s32.totalorder %s28, %s29
      %p43 = scmp.eq.s32.totalorder %s21, 1
      %p44 = por %p42, %p43
      %p46 = scmp.ne.s32.totalorder %s29, %s45
      %p47 = scmp.eq.s32.totalorder %s21, 0
      %p48 = por %p46, %p47
      %s50 = sadd.s32 %s49, 1
      %p53 = scmp.eq.s32.totalorder %s15, 1
      %p54 = scmp.ne.s32.totalorder %s49, %s51
      %p55 = scmp.eq.s32.totalorder %s15, 0
      %p56 = por %p54, %p55
      %p57 = scmp.ne.s32.totalorder %s49, %s51
      %p58 = scmp.eq.s32.totalorder %s20, 1
      %p59 = por %p57, %p58
      %p60 = scmp.ne.s32.totalorder %s51, %s52
      %p61 = scmp.eq.s32.totalorder %s20, 0
      %p62 = por %p60, %p61
      %p63 = scmp.ne.s32.totalorder %s51, %s52
      %p64 = scmp.eq.s32.totalorder %s21, 1
      %p65 = por %p63, %p64
      %p67 = scmp.ne.s32.totalorder %s52, %s66
      %p68 = scmp.eq.s32.totalorder %s21, 0
      %p69 = por %p67, %p68
      %s70 = ssub.s32 %s15, %s22
      %p71 = scmp.eq.s32.totalorder %s70, 0
      %s73 = sadd.s32 %s72, 1
      %s74 = scalar_select %p71, %s72, %s73
      %p77 = pneg %p71
      %p78 = scmp.eq.s32.totalorder %s15, 1
      %p79 = por %p77, %p78
      %p80 = scmp.ne.s32.totalorder %s72, %s75
      %p81 = scmp.eq.s32.totalorder %s15, 0
      %p82 = por %p80, %p81
      %p83 = scmp.ne.s32.totalorder %s72, %s75
      %p84 = scmp.eq.s32.totalorder %s20, 1
      %p85 = por %p83, %p84
      %p86 = scmp.ne.s32.totalorder %s75, %s76
      %p87 = scmp.eq.s32.totalorder %s20, 0
      %p88 = por %p86, %p87
      %p89 = scmp.ne.s32.totalorder %s75, %s76
      %p90 = scmp.eq.s32.totalorder %s21, 1
      %p91 = por %p89, %p90
      %p93 = scmp.ne.s32.totalorder %s76, %s92
      %p94 = scmp.eq.s32.totalorder %s21, 0
      %p95 = por %p93, %p94
      %p96 = scmp.le.s32.totalorder 1, %s15
      %p97 = scmp.lt.s32.totalorder %s15, 3
      %p98 = pnand %p96, %p97
      %p99 = pneg %p98
      // Predicated region
      $region9: #{tpu_custom_call.1} parent=5 // pred_check
        _
      $region10: #{tpu_custom_call.1} parent=5 // pred_check_branch
        %101 = sbr.rel (%p98) target = $region12
      $region11: #{tpu_custom_call.1} parent=5 // pred_region
        %s102 = ssub.s32 %s15, 1
        // Predicated region
        $region13: #{tpu_custom_call.1} parent=11 // pred_check
          %p103 = pneg %p62
        $region14: #{tpu_custom_call.1} parent=11 // pred_check_branch
          %105 = sbr.rel (%p103) target = $region16
        $region15: #{tpu_custom_call.1} parent=11 // pred_region
          %s107 = ssub.s32 64, 64
          %108 = vsyncadd [#allocation6], %s107
          %s110 = sshll.u32 [#allocation5], 4
          %s111 = int_to_ptr.vmem [resolvable:$true] %s110
          %113 = dma.hbm_to_vmem [thread:$0]  %s1, 64, %s111, [#allocation6]
        $region16: #{tpu_custom_call.1} parent=11 // pred_fallthru
          _
      $region12: #{tpu_custom_call.1} parent=5 // pred_fallthru
        _
      %p114 = scmp.lt.s32.totalorder %s15, 2
      // Predicated region
      $region17: #{tpu_custom_call.1} parent=5 // pred_check
        %p115 = pneg %p114
      $region18: #{tpu_custom_call.1} parent=5 // pred_check_branch
        %117 = sbr.rel (%p115) target = $region20
      $region19: #{tpu_custom_call.1} parent=5 // pred_region
        // Predicated region
        $region21: #{tpu_custom_call.1} parent=19 // pred_check
          %p118 = pneg %p35
        $region22: #{tpu_custom_call.1} parent=19 // pred_check_branch
          %120 = sbr.rel (%p118) target = $region24
        $region23: #{tpu_custom_call.1} parent=19 // pred_region
          %s121 = sand.u32 %s25, 1
          %s122 = scalar_lea.sflag [#allocation3], %s121
          %s123 = sand.u32 %s25, 1
          %s124 = smul.addr %s123, 64
          %s125 = scalar_lea.vmem [#allocation2], %s124
          %s126 = smul.u32 2, %s15
          %s128 = ssub.s32 1024, 1024
          %129 = vsyncadd %s122, %s128
          %s130 = smul.addr %s126, 4
          %s131 = smul.addr %s130, 128
          %s132 = scalar_lea.hbm %s0, %s131
          %s133 = sshll.u32 %s125, 4
          %s134 = int_to_ptr.vmem [resolvable:$true] %s133
          %139 = dma.hbm_to_vmem [thread:$0]  %s132, 1024, %s134, %s122, 512, 512, 32
        $region24: #{tpu_custom_call.1} parent=19 // pred_fallthru
          _
      $region20: #{tpu_custom_call.1} parent=5 // pred_fallthru
        _
      %p140 = scmp.le.s32.totalorder 1, %s15
      %p141 = scmp.lt.s32.totalorder %s15, 3
      %p142 = pnand %p140, %p141
      %p143 = pneg %p142
      // Predicated region
      $region25: #{tpu_custom_call.1} parent=5 // pred_check
        _
      $region26: #{tpu_custom_call.1} parent=5 // pred_check_branch
        %145 = sbr.rel (%p142) target = $region28
      $region27: #{tpu_custom_call.1} parent=5 // pred_region
        %s146 = ssub.s32 %s15, 1
        %s147 = sand.u32 %s28, 1
        %s148 = scalar_lea.sflag [#allocation3], %s147
        %s149 = sand.u32 %s28, 1
        %s150 = smul.addr %s149, 64
        %s151 = scalar_lea.vmem [#allocation2], %s150
        // Predicated region
        $region29: #{tpu_custom_call.1} parent=27 // pred_check
          %p152 = pneg %p41
        $region30: #{tpu_custom_call.1} parent=27 // pred_check_branch
          %154 = sbr.rel (%p152) target = $region32
        $region31: #{tpu_custom_call.1} parent=27 // pred_region
          %155 = dma.done %s148, 1024
        $region32: #{tpu_custom_call.1} parent=27 // pred_fallthru
          _
        // Predicated region
        $region33: #{tpu_custom_call.1} parent=27 // pred_check
          %p156 = pneg %p62
        $region34: #{tpu_custom_call.1} parent=27 // pred_check_branch
          %158 = sbr.rel (%p156) target = $region36
        $region35: #{tpu_custom_call.1} parent=27 // pred_region
          %159 = dma.done [#allocation6], 64
        $region36: #{tpu_custom_call.1} parent=27 // pred_fallthru
          _
        %s160 = sand.u32 %s28, 1
        %s161 = scalar_lea.sflag [#allocation3], %s160
        %s162 = sand.u32 %s28, 1
        %s163 = smul.addr %s162, 64
        %s164 = scalar_lea.vmem [#allocation2], %s163
        %p165 = pneg %p41
        %p166 = pneg %p38
        %p167 = pneg %p62
        %p168 = pneg %p59
        %p169 = pneg %p88
        %p170 = pneg %p85
        %s171 = sand.u32 %s75, 1
        %s172 = scalar_lea.sflag [#allocation4], %s171
        %s173 = sand.u32 %s75, 1
        %s174 = smul.addr %s173, 64
        %s175 = scalar_lea.vmem [#allocation7], %s174
        %s176 = smul.u32 2, %s20
        %s177 = smul.u32 2, %s20
        %v178 = vld [vmem:[#allocation5] sm:$0xf]
        %v179 = vld [vmem:[%s151] sm:$0xff]
        %v180 = vld [vmem:[%s151 + $0x8] sm:$0xff]
        %v181 = vld [vmem:[%s151 + $0x10] sm:$0xff]
        %v182 = vld [vmem:[%s151 + $0x18] sm:$0xff]
        %v183 = vld [vmem:[%s151 + $0x20] sm:$0xff]
        %v184 = vld [vmem:[%s151 + $0x28] sm:$0xff]
        %v185 = vld [vmem:[%s151 + $0x30] sm:$0xff]
        %v186 = vld [vmem:[%s151 + $0x38] sm:$0xff]
        %v188 = vlaneseq
        %v189 = vshrl.u32 %v188, 7
        %v190 = vsub.s32 0, %v189
        %v191 = vrot.slane %v178, %v190
        %v192 = vlaneseq
        %v193 = vshrl.u32 %v192, 7
        %v194 = vsub.s32 1, %v193
        %v195 = vrot.slane %v178, %v194
        %v196 = vlaneseq
        %v197 = vshrl.u32 %v196, 7
        %v198 = vsub.s32 2, %v197
        %v199 = vrot.slane %v178, %v198
        %v200 = vlaneseq
        %v201 = vshrl.u32 %v200, 7
        %v202 = vsub.s32 3, %v201
        %v203 = vrot.slane %v178, %v202
        %v208 = vmul.f32 %v179, %v191
        %v209 = vmul.f32 %v180, %v195
        %v210 = vmul.f32 %v181, %v199
        %v211 = vmul.f32 %v182, %v203
        %v212 = vmul.f32 %v183, %v191
        %v213 = vmul.f32 %v184, %v195
        %v214 = vmul.f32 %v185, %v199
        %v215 = vmul.f32 %v186, %v203
        %v216 = vadd.f32 %v208, %v191
        %v217 = vadd.f32 %v209, %v195
        %v218 = vadd.f32 %v210, %v199
        %v219 = vadd.f32 %v211, %v203
        %v220 = vadd.f32 %v212, %v191
        %v221 = vadd.f32 %v213, %v195
        %v222 = vadd.f32 %v214, %v199
        %v223 = vadd.f32 %v215, %v203
        %224 = vst [vmem:[%s175] sm:$0xff] %v216
        %225 = vst [vmem:[%s175 + $0x8] sm:$0xff] %v217
        %226 = vst [vmem:[%s175 + $0x10] sm:$0xff] %v218
        %227 = vst [vmem:[%s175 + $0x18] sm:$0xff] %v219
        %228 = vst [vmem:[%s175 + $0x20] sm:$0xff] %v220
        %229 = vst [vmem:[%s175 + $0x28] sm:$0xff] %v221
        %230 = vst [vmem:[%s175 + $0x30] sm:$0xff] %v222
        %231 = vst [vmem:[%s175 + $0x38] sm:$0xff] %v223
        %s232 = sand.u32 %s75, 1
        %s233 = scalar_lea.sflag [#allocation4], %s232
        %s234 = sand.u32 %s75, 1
        %s235 = smul.addr %s234, 64
        %s236 = scalar_lea.vmem [#allocation7], %s235
        // Predicated region
        $region37: #{tpu_custom_call.1} parent=27 // pred_check
          %p237 = pneg %p85
        $region38: #{tpu_custom_call.1} parent=27 // pred_check_branch
          %239 = sbr.rel (%p237) target = $region40
        $region39: #{tpu_custom_call.1} parent=27 // pred_region
          %s240 = smul.u32 2, %s20
          %s242 = ssub.s32 1024, 1024
          %243 = vsyncadd %s233, %s242
          %s244 = smul.addr %s240, 4
          %s245 = smul.addr %s244, 128
          %s246 = scalar_lea.hbm %s2, %s245
          %s247 = sshll.u32 %s236, 4
          %s248 = int_to_ptr.vmem [resolvable:$true] %s247
          %253 = dma.vmem_to_hbm [thread:$0]  %s248, 1024, %s246, %s233, 512, 512, 32
        $region40: #{tpu_custom_call.1} parent=27 // pred_fallthru
          _
      $region28: #{tpu_custom_call.1} parent=5 // pred_fallthru
        _
      %p254 = scmp.le.s32.totalorder 2, %s15
      // Predicated region
      $region41: #{tpu_custom_call.1} parent=5 // pred_check
        %p255 = pneg %p254
      $region42: #{tpu_custom_call.1} parent=5 // pred_check_branch
        %257 = sbr.rel (%p255) target = $region44
      $region43: #{tpu_custom_call.1} parent=5 // pred_region
        %s258 = ssub.s32 %s15, 2
        // Predicated region
        $region45: #{tpu_custom_call.1} parent=43 // pred_check
          %p259 = pneg %p91
        $region46: #{tpu_custom_call.1} parent=43 // pred_check_branch
          %261 = sbr.rel (%p259) target = $region48
        $region47: #{tpu_custom_call.1} parent=43 // pred_region
          %s262 = sand.u32 %s76, 1
          %s263 = scalar_lea.sflag [#allocation4], %s262
          %s264 = sand.u32 %s76, 1
          %s265 = smul.addr %s264, 64
          %s266 = scalar_lea.vmem [#allocation7], %s265
          %267 = dma.done %s263, 1024
        $region48: #{tpu_custom_call.1} parent=43 // pred_fallthru
          _
      $region44: #{tpu_custom_call.1} parent=5 // pred_fallthru
        _
    $region6: #{tpu_custom_call.1} parent=1 // loop_footer
      %s19 = sadd.s32 1, %s15
    $region7: #{tpu_custom_call.1} parent=1 // loop_footer_branch
      %14 = sbr.rel target = $region3
    $region8: #{tpu_custom_call.1} parent=1 // loop_exit
      _
    %268 = vsyncpa [#allocation3], 1
    %s269 = scalar_lea.sflag [#allocation3], 1
    %270 = vsyncpa %s269, 1
    %271 = vsyncpa [#allocation6], 1
    %272 = vsyncpa [#allocation4], 1
    %s273 = scalar_lea.sflag [#allocation4], 1
    %274 = vsyncpa %s273, 1

</llo_original>
